<compile_context>
chip_gen: v5e
topology: v5e:2x2
jax: 0.10.0
libtpu: 0.0.40
codegen_flags: <defaults>
</compile_context>

<pallas_src>
import math

import jax
import jax.numpy as jnp
from jax.experimental import pallas as pl
from jax.experimental.pallas import tpu as pltpu

_VMEM_BUDGET_BYTES = 24 * 1024 * 1024   # tile-sizing budget
_VMEM_LIMIT_BYTES = 32 * 1024 * 1024    # scoped-VMEM limit (safe on v5e/v6e/v7x)


def _mlp_eval_kernel(x_ref, w0_ref, w1_ref, o_ref):
    # hidden = relu(x @ W0): MXU matmul, f32 accumulation.
    h = jnp.dot(x_ref[...], w0_ref[...], preferred_element_type=jnp.float32)
    h = jnp.maximum(h, 0.0)

    # logits = hidden @ W1: also on the MXU (f32).  An output width of 1
    # "wastes" MXU columns, but the MXU is idle in this memory-bound kernel,
    # whereas the previous VPU-mul + cross-lane XLU reduce scaled with rows
    # and was the likely saturating slot.
    z = jnp.dot(h, w1_ref[...], preferred_element_type=jnp.float32)

    o_ref[...] = jax.nn.sigmoid(z).astype(o_ref.dtype)
    # TODO(synk): output block is (tile_n, 1) -> sublane-dense column stores.
    # A lane-dense (1, tile_n) output needs an in-kernel (tile_n,1)->(1,tile_n)
    # relayout whose Mosaic lowering is not guaranteed across versions; the
    # column stores stay under the HBM DMA window on v5e/v6e and only bind on
    # the v7x low-precision path, so the simple, known-good layout is kept.


def _round_up(x, m):
    return ((x + m - 1) // m) * m


def _pick_tile_n(N, E, in_itemsize, w_itemsize):
    """Largest 128-aligned row tile that fits VMEM; >=2 grid steps when N allows."""
    # Residency that does not scale with tile_n (worst case: double-buffered W0).
    resident = 2 * E * E * w_itemsize + 2 * E * 4
    budget = max(2 * 1024 * 1024, _VMEM_BUDGET_BYTES - resident)
    # Per-row cost: double-buffered input stream + f32 hidden intermediate + output.
    per_row = 2 * E * in_itemsize + 4 * E + 2 * 4
    cap = max(128, min(4096, (budget // per_row) // 128 * 128))
    # At least two grid steps so both v7x TensorCores get work on small N.
    want = max(128, _round_up(pl.cdiv(N, 2), 128))
    return min(cap, want)


def mlp_evaluation(inputs, w0, w1, *, tile_n=None):
    """sigmoid(relu(inputs @ W0) @ W1) via a single Pallas kernel."""
    N, E = inputs.shape
    assert w0.shape == (E, E) and w1.shape == (E, 1)
    out_dtype = inputs.dtype

    # Match W0 to the input dtype (one-time O(E^2) cast; `inputs` itself is
    # never padded, cast, or copied in the wrapper).  W1 stays f32 for the
    # f32-accumulated second projection.
    w0c = w0 if w0.dtype == inputs.dtype else w0.astype(inputs.dtype)
    w1f = w1 if w1.dtype == jnp.float32 else w1.astype(jnp.float32)

    if tile_n is None:
        tile_n = _pick_tile_n(
            N, E,
            jnp.dtype(inputs.dtype).itemsize,
            jnp.dtype(w0c.dtype).itemsize,
        )

    grid = (pl.cdiv(N, tile_n),)   # last block may be partial; no padding needed.

    out = pl.pallas_call(
        _mlp_eval_kernel,
        out_shape=jax.ShapeDtypeStruct((N, 1), out_dtype),
        grid_spec=pltpu.PrefetchScalarGridSpec(
            num_scalar_prefetch=0,
            grid=grid,
            in_specs=[
                pl.BlockSpec((tile_n, E), lambda i: (i, 0)),  # row tile of inputs
                pl.BlockSpec((E, E), lambda i: (0, 0)),       # W0, VMEM-resident
                pl.BlockSpec((E, 1), lambda i: (0, 0)),       # W1, VMEM-resident
            ],
            out_specs=pl.BlockSpec((tile_n, 1), lambda i: (i, 0)),
        ),
        compiler_params=pltpu.CompilerParams(
            # Row tiles are independent -> shard across TensorCores (v7x).
            dimension_semantics=("parallel",),
            vmem_limit_bytes=_VMEM_LIMIT_BYTES,
        ),
    )(inputs, w0c, w1f)
    return out


def xavier_uniform(key, shape, dtype=jnp.float32):
    fan_in, fan_out = shape[0], shape[1]
    bound = math.sqrt(6.0 / (fan_in + fan_out))
    return jax.random.uniform(key, shape, dtype=dtype, minval=-bound, maxval=bound)


if __name__ == "__main__":
    key = jax.random.PRNGKey(0)
    k_x, k_w0, k_w1, k_x2 = jax.random.split(key, 4)

    # Small shapes consistent with the module: emb_size = 128, N = 256 rows.
    N, E = 256, 128
    inputs = jax.random.normal(k_x, (N, E), dtype=jnp.float32)
    W0 = xavier_uniform(k_w0, (E, E))
    W1 = xavier_uniform(k_w1, (E, 1))

    ref = jax.nn.sigmoid(jnp.maximum(inputs @ W0, 0.0) @ W1)

    # 1) f32 path (2 grid steps so both v7x TensorCores would be used).
    out = jax.block_until_ready(mlp_evaluation(inputs, W0, W1))
    assert out.shape == (N, 1)
    assert jnp.allclose(out, ref, atol=1e-5, rtol=1e-5)

    # 2) bf16 MXU fast path: the *caller* supplies bf16 inputs (no wrapper cast).
    inputs_bf16 = inputs.astype(jnp.bfloat16)
    out_bf16 = jax.block_until_ready(mlp_evaluation(inputs_bf16, W0, W1))
    assert out_bf16.dtype == jnp.bfloat16
    assert jnp.allclose(out_bf16.astype(jnp.float32), ref, atol=2e-2, rtol=2e-2)

    # 3) Non-tile-multiple N -> partial last block, no wrapper padding.
    N2 = 300
    inputs2 = jax.random.normal(k_x2, (N2, E), dtype=jnp.float32)
    ref2 = jax.nn.sigmoid(jnp.maximum(inputs2 @ W0, 0.0) @ W1)
    out2 = jax.block_until_ready(mlp_evaluation(inputs2, W0, W1))
    assert out2.shape == (N2, 1)
    assert jnp.allclose(out2, ref2, atol=1e-5, rtol=1e-5)

    print("KERNEL_OK")
</pallas_src>

<mosaic_0001>
module attributes {stable_mosaic.version = 11 : i64} {
  func.func @_mlp_eval_kernel(%arg0: i32, %arg1: memref<128x128xf32, #tpu.memory_space<vmem>>, %arg2: memref<128x128xf32, #tpu.memory_space<vmem>>, %arg3: memref<128x1xf32, #tpu.memory_space<vmem>>, %arg4: memref<128x1xf32, #tpu.memory_space<vmem>>) attributes {dimension_semantics = [#tpu.dimension_semantics<parallel>], iteration_bounds = array<i64: 2>, scalar_prefetch = 0 : i64, scratch_operands = 0 : i64, tpu.core_type = #tpu.core_type<tc>, window_params = [{transform_indices = @transform_0, window_bounds = array<i64: 128, 128>}, {pipeline_mode = #tpu.pipeline_mode<synchronous>, transform_indices = @transform_1, window_bounds = array<i64: 128, 128>}, {pipeline_mode = #tpu.pipeline_mode<synchronous>, transform_indices = @transform_2, window_bounds = array<i64: 128, 1>}, {transform_indices = @transform_3, window_bounds = array<i64: 128, 1>}]} {
    %c0 = arith.constant 0 : index
    %c0_0 = arith.constant 0 : index
    %0 = vector.load %arg1[%c0, %c0_0] : memref<128x128xf32, #tpu.memory_space<vmem>>, vector<128x128xf32>
    %c0_1 = arith.constant 0 : index
    %c0_2 = arith.constant 0 : index
    %1 = vector.load %arg2[%c0_1, %c0_2] : memref<128x128xf32, #tpu.memory_space<vmem>>, vector<128x128xf32>
    %cst = arith.constant dense<0.000000e+00> : vector<128x128xf32>
    %2 = tpu.matmul %0, %1, %cst {dimension_numbers = #tpu.dot_dimension_numbers<[1], [0], [0], [1], [0, 0, 1, 1], [], []>} : vector<128x128xf32>, vector<128x128xf32>, vector<128x128xf32> -> vector<128x128xf32>
    %cst_3 = arith.constant 0.000000e+00 : f32
    %3 = vector.broadcast %cst_3 : f32 to vector<128x128xf32>
    %4 = arith.maximumf %2, %3 : vector<128x128xf32>
    %c0_4 = arith.constant 0 : index
    %c0_5 = arith.constant 0 : index
    %5 = vector.load %arg3[%c0_4, %c0_5] : memref<128x1xf32, #tpu.memory_space<vmem>>, vector<128x1xf32>
    %cst_6 = arith.constant dense<0.000000e+00> : vector<128x1xf32>
    %6 = tpu.matmul %4, %5, %cst_6 {dimension_numbers = #tpu.dot_dimension_numbers<[1], [0], [0], [1], [0, 0, 1, 1], [], []>} : vector<128x128xf32>, vector<128x1xf32>, vector<128x1xf32> -> vector<128x1xf32>
    %7 = arith.negf %6 : vector<128x1xf32>
    %8 = math.exp %7 : vector<128x1xf32>
    %cst_7 = arith.constant 1.000000e+00 : f32
    %9 = vector.broadcast %cst_7 : f32 to vector<128x1xf32>
    %10 = arith.addf %9, %8 : vector<128x1xf32>
    %11 = arith.divf %9, %10 : vector<128x1xf32>
    %c0_8 = arith.constant 0 : index
    %c0_9 = arith.constant 0 : index
    %12 = vector.load %arg4[%c0_8, %c0_9] : memref<128x1xf32, #tpu.memory_space<vmem>>, vector<128x1xf32>
    tpu.vector_store %arg4[%c0_8, %c0_9], %11 {strides = array<i32>} : memref<128x1xf32, #tpu.memory_space<vmem>>, vector<128x1xf32>,
    return
  }
  func.func @transform_0(%arg0: i32) -> (i32, i32) {
    %c0_i32 = arith.constant 0 : i32
    %c0_i32_0 = arith.constant 0 : i32
    return %arg0, %c0_i32 : i32, i32
  }
  func.func @transform_1(%arg0: i32) -> (i32, i32) {
    %c0_i32 = arith.constant 0 : i32
    %c0_i32_0 = arith.constant 0 : i32
    %c0_i32_1 = arith.constant 0 : i32
    return %c0_i32, %c0_i32_0 : i32, i32
  }
  func.func @transform_2(%arg0: i32) -> (i32, i32) {
    %c0_i32 = arith.constant 0 : i32
    %c0_i32_0 = arith.constant 0 : i32
    %c0_i32_1 = arith.constant 0 : i32
    return %c0_i32, %c0_i32_0 : i32, i32
  }
  func.func @transform_3(%arg0: i32) -> (i32, i32) {
    %c0_i32 = arith.constant 0 : i32
    %c0_i32_0 = arith.constant 0 : i32
    return %arg0, %c0_i32 : i32, i32
  }
}

</mosaic_0001>

<llo_original>
// kernel: tpu_custom_call.1
$region0: #{tpu_custom_call.1}
  #allocation0 [shape = 'u32[]', space=smem, size = 0x4, offset = 0x4, fixed_abs, tag = 'smem constant byte address 0x4 - core index']
  #allocation1 [shape = 'u32[72,128]{1,0:T(1,128)}', space=vmem, size = 0x9000, scoped, tag = 'internal scratch']
  %s0 = inlined_call_operand.hbm [shape: f32[256,128], index: 0, kind: input, shape index: {}]
  %s1 = inlined_call_operand.vmem [shape: f32[128,128], index: 1, kind: input, shape index: {}]
  %s2 = inlined_call_operand.vmem [shape: f32[128,1], index: 2, kind: input, shape index: {}]
  %s3 = inlined_call_operand.vmem [shape: f32[256,1], index: 3, kind: output, shape index: {}]
  %s4 = sld [smem:[#allocation0]]
  $region49: #{tpu_custom_call.1} parent=0
    _
  %s6 = ssub.s32 1, %s4
  %s7 = scalar_select 0, %s6, %s4
  $region1: #{tpu_custom_call.1} parent=0
    #allocation2 [shape = 'u8[131072]{0}', space=vmem, size = 0x20000, scoped, tag = 'input window, operand 0']
    #allocation3 [shape = 's32[2]{0}', space=sflag, size = 0x8, scoped, tag = 'scoped memory for tpu_custom_call.1']
    %8 = vsyncpa [#allocation3], 0
    %s9 = scalar_lea.sflag [#allocation3], 1
    %10 = vsyncpa %s9, 0
    loop: start=0, step=1, limit=4
    $region2: #{tpu_custom_call.1} parent=1 // loop_pre_header
      _
    $region3: #{tpu_custom_call.1} parent=1 // loop_header
      %s12 = sphi 0, %s16
      %p13 = scmp.ge.s32.totalorder %s12, 4
      %s22 = sphi 0, %s24
      %s25 = sphi 0, %s22
      %s26 = sphi 0, %s25
      %s42 = sphi 0, %s26
      %s46 = sphi 0, %s46
      %s48 = sphi 0, %s46
      %s49 = sphi 0, %s48
      %s63 = sphi 0, %s49
      %s67 = sphi 0, %s67
      %s69 = sphi 0, %s67
      %s70 = sphi 0, %s69
      %s84 = sphi 0, %s70
      %s90 = sphi 0, %s92
      %s93 = sphi 0, %s90
      %s94 = sphi 0, %s93
      %s110 = sphi 0, %s94
    $region4: #{tpu_custom_call.1} parent=1 // loop_header_branch
      %15 = sbr.rel (%p13) target = $region8
    $region5: #{tpu_custom_call.1} parent=1 // loop_body
      %s17 = ssub.s32 %s12, 1
      %s18 = ssub.s32 %s12, 2
      %s19 = sadd.s32 %s12, 1
      %s20 = ssub.s32 %s12, %s19
      %p21 = scmp.eq.s32.totalorder %s20, 0
      %s23 = sadd.s32 %s22, 1
      %s24 = scalar_select %p21, %s22, %s23
      %p27 = pneg %p21
      %p28 = scmp.eq.s32.totalorder %s12, 1
      %p29 = por %p27, %p28
      %p30 = scmp.ne.s32.totalorder %s22, %s25
      %p31 = scmp.eq.s32.totalorder %s12, 0
      %p32 = por %p30, %p31
      %p33 = scmp.ne.s32.totalorder %s22, %s25
      %p34 = scmp.eq.s32.totalorder %s17, 1
      %p35 = por %p33, %p34
      %p36 = scmp.ne.s32.totalorder %s25, %s26
      %p37 = scmp.eq.s32.totalorder %s17, 0
      %p38 = por %p36, %p37
      %p39 = scmp.ne.s32.totalorder %s25, %s26
      %p40 = scmp.eq.s32.totalorder %s18, 1
      %p41 = por %p39, %p40
      %p43 = scmp.ne.s32.totalorder %s26, %s42
      %p44 = scmp.eq.s32.totalorder %s18, 0
      %p45 = por %p43, %p44
      %s47 = sadd.s32 %s46, 1
      %p50 = scmp.eq.s32.totalorder %s12, 1
      %p51 = scmp.ne.s32.totalorder %s46, %s48
      %p52 = scmp.eq.s32.totalorder %s12, 0
      %p53 = por %p51, %p52
      %p54 = scmp.ne.s32.totalorder %s46, %s48
      %p55 = scmp.eq.s32.totalorder %s17, 1
      %p56 = por %p54, %p55
      %p57 = scmp.ne.s32.totalorder %s48, %s49
      %p58 = scmp.eq.s32.totalorder %s17, 0
      %p59 = por %p57, %p58
      %p60 = scmp.ne.s32.totalorder %s48, %s49
      %p61 = scmp.eq.s32.totalorder %s18, 1
      %p62 = por %p60, %p61
      %p64 = scmp.ne.s32.totalorder %s49, %s63
      %p65 = scmp.eq.s32.totalorder %s18, 0
      %p66 = por %p64, %p65
      %s68 = sadd.s32 %s67, 1
      %p71 = scmp.eq.s32.totalorder %s12, 1
      %p72 = scmp.ne.s32.totalorder %s67, %s69
      %p73 = scmp.eq.s32.totalorder %s12, 0
      %p74 = por %p72, %p73
      %p75 = scmp.ne.s32.totalorder %s67, %s69
      %p76 = scmp.eq.s32.totalorder %s17, 1
      %p77 = por %p75, %p76
      %p78 = scmp.ne.s32.totalorder %s69, %s70
      %p79 = scmp.eq.s32.totalorder %s17, 0
      %p80 = por %p78, %p79
      %p81 = scmp.ne.s32.totalorder %s69, %s70
      %p82 = scmp.eq.s32.totalorder %s18, 1
      %p83 = por %p81, %p82
      %p85 = scmp.ne.s32.totalorder %s70, %s84
      %p86 = scmp.eq.s32.totalorder %s18, 0
      %p87 = por %p85, %p86
      %s88 = ssub.s32 %s12, %s19
      %p89 = scmp.eq.s32.totalorder %s88, 0
      %s91 = sadd.s32 %s90, 1
      %s92 = scalar_select %p89, %s90, %s91
      %p95 = pneg %p89
      %p96 = scmp.eq.s32.totalorder %s12, 1
      %p97 = por %p95, %p96
      %p98 = scmp.ne.s32.totalorder %s90, %s93
      %p99 = scmp.eq.s32.totalorder %s12, 0
      %p100 = por %p98, %p99
      %p101 = scmp.ne.s32.totalorder %s90, %s93
      %p102 = scmp.eq.s32.totalorder %s17, 1
      %p103 = por %p101, %p102
      %p104 = scmp.ne.s32.totalorder %s93, %s94
      %p105 = scmp.eq.s32.totalorder %s17, 0
      %p106 = por %p104, %p105
      %p107 = scmp.ne.s32.totalorder %s93, %s94
      %p108 = scmp.eq.s32.totalorder %s18, 1
      %p109 = por %p107, %p108
      %p111 = scmp.ne.s32.totalorder %s94, %s110
      %p112 = scmp.eq.s32.totalorder %s18, 0
      %p113 = por %p111, %p112
      %p114 = scmp.le.s32.totalorder 1, %s12
      %p115 = scmp.lt.s32.totalorder %s12, 3
      %p116 = pnand %p114, %p115
      %p117 = pneg %p116
      // Predicated region
      $region9: #{tpu_custom_call.1} parent=5 // pred_check
        _
      $region10: #{tpu_custom_call.1} parent=5 // pred_check_branch
        %119 = sbr.rel (%p116) target = $region12
      $region11: #{tpu_custom_call.1} parent=5 // pred_region
        %s120 = ssub.s32 %s12, 1
        // Predicated region
        $region13: #{tpu_custom_call.1} parent=11 // pred_check
          %p121 = pneg %p59
        $region14: #{tpu_custom_call.1} parent=11 // pred_check_branch
          %123 = sbr.rel (%p121) target = $region16
        $region15: #{tpu_custom_call.1} parent=11 // pred_region
          _
        $region16: #{tpu_custom_call.1} parent=11 // pred_fallthru
          _
        // Predicated region
        $region17: #{tpu_custom_call.1} parent=11 // pred_check
          %p124 = pneg %p80
        $region18: #{tpu_custom_call.1} parent=11 // pred_check_branch
          %126 = sbr.rel (%p124) target = $region20
        $region19: #{tpu_custom_call.1} parent=11 // pred_region
          _
        $region20: #{tpu_custom_call.1} parent=11 // pred_fallthru
          _
      $region12: #{tpu_custom_call.1} parent=5 // pred_fallthru
        _
      %p127 = scmp.lt.s32.totalorder %s12, 2
      // Predicated region
      $region21: #{tpu_custom_call.1} parent=5 // pred_check
        %p128 = pneg %p127
      $region22: #{tpu_custom_call.1} parent=5 // pred_check_branch
        %130 = sbr.rel (%p128) target = $region24
      $region23: #{tpu_custom_call.1} parent=5 // pred_region
        // Predicated region
        $region25: #{tpu_custom_call.1} parent=23 // pred_check
          %p131 = pneg %p32
        $region26: #{tpu_custom_call.1} parent=23 // pred_check_branch
          %133 = sbr.rel (%p131) target = $region28
        $region27: #{tpu_custom_call.1} parent=23 // pred_region
          %s134 = sand.u32 %s22, 1
          %s135 = scalar_lea.sflag [#allocation3], %s134
          %s136 = sand.u32 %s22, 1
          %s137 = smul.addr %s136, 128
          %s138 = scalar_lea.vmem [#allocation2], %s137
          %s139 = smul.u32 16, %s12
          %141 = vsyncadd %s135, 0
          %s142 = smul.addr %s139, 8
          %s143 = scalar_lea.hbm %s0, %s142
          %s144 = sshll.u32 %s143, 4
          %s145 = int_to_ptr.hbm [resolvable:$true] %s144
          %s146 = sshll.u32 %s138, 4
          %s147 = int_to_ptr.vmem [resolvable:$true] %s146
          %152 = dma.hbm_to_vmem [thread:$0]  %s145, 2048, %s147, %s135, 128, 128, 8
        $region28: #{tpu_custom_call.1} parent=23 // pred_fallthru
          _
      $region24: #{tpu_custom_call.1} parent=5 // pred_fallthru
        _
      %p153 = scmp.le.s32.totalorder 1, %s12
      %p154 = scmp.lt.s32.totalorder %s12, 3
      %p155 = pnand %p153, %p154
      %p156 = pneg %p155
      // Predicated region
      $region29: #{tpu_custom_call.1} parent=5 // pred_check
        _
      $region30: #{tpu_custom_call.1} parent=5 // pred_check_branch
        %158 = sbr.rel (%p155) target = $region32
      $region31: #{tpu_custom_call.1} parent=5 // pred_region
        %s159 = ssub.s32 %s12, 1
        %s160 = sand.u32 %s25, 1
        %s161 = scalar_lea.sflag [#allocation3], %s160
        %s162 = sand.u32 %s25, 1
        %s163 = smul.addr %s162, 128
        %s164 = scalar_lea.vmem [#allocation2], %s163
        // Predicated region
        $region33: #{tpu_custom_call.1} parent=31 // pred_check
          %p165 = pneg %p38
        $region34: #{tpu_custom_call.1} parent=31 // pred_check_branch
          %167 = sbr.rel (%p165) target = $region36
        $region35: #{tpu_custom_call.1} parent=31 // pred_region
          %169 = dma.done %s161, 2048
        $region36: #{tpu_custom_call.1} parent=31 // pred_fallthru
          _
        %s170 = sand.u32 %s25, 1
        %s171 = scalar_lea.sflag [#allocation3], %s170
        %s172 = sand.u32 %s25, 1
        %s173 = smul.addr %s172, 128
        %s174 = scalar_lea.vmem [#allocation2], %s173
        %p175 = pneg %p38
        %p176 = pneg %p35
        %p177 = pneg %p59
        %p178 = pneg %p56
        %p179 = pneg %p80
        %p180 = pneg %p77
        %p181 = pneg %p106
        %p182 = pneg %p103
        %s183 = smul.u32 16, %s17
        %p184 = scmp.lt.s32.totalorder %s183, 31
        %s185 = scalar_select %p184, %s183, 31
        %s186 = smul.addr %s185, 8
        %s187 = scalar_lea.vmem %s3, %s186
        %s188 = smul.u32 16, %s17
        %s189 = smul.u32 16, %s17
        %p190 = scmp.lt.s32.totalorder %s189, 31
        %s191 = scalar_select %p190, %s189, 31
        %s192 = smul.addr %s191, 8
        %s193 = scalar_lea.vmem %s3, %s192
        %s194 = smul.u32 16, %s17
        %v195 = vld [vmem:[%s164] sm:$0xff]
        %v196 = vld [vmem:[%s164 + $0x8] sm:$0xff]
        %v197 = vld [vmem:[%s164 + $0x10] sm:$0xff]
        %v198 = vld [vmem:[%s164 + $0x18] sm:$0xff]
        %v199 = vld [vmem:[%s164 + $0x20] sm:$0xff]
        %v200 = vld [vmem:[%s164 + $0x28] sm:$0xff]
        %v201 = vld [vmem:[%s164 + $0x30] sm:$0xff]
        %v202 = vld [vmem:[%s164 + $0x38] sm:$0xff]
        %v203 = vld [vmem:[%s164 + $0x40] sm:$0xff]
        %v204 = vld [vmem:[%s164 + $0x48] sm:$0xff]
        %v205 = vld [vmem:[%s164 + $0x50] sm:$0xff]
        %v206 = vld [vmem:[%s164 + $0x58] sm:$0xff]
        %v207 = vld [vmem:[%s164 + $0x60] sm:$0xff]
        %v208 = vld [vmem:[%s164 + $0x68] sm:$0xff]
        %v209 = vld [vmem:[%s164 + $0x70] sm:$0xff]
        %v210 = vld [vmem:[%s164 + $0x78] sm:$0xff]
        %v211 = vld [vmem:[%s1] sm:$0xff]
        %v212 = vld [vmem:[%s1 + $0x8] sm:$0xff]
        %v213 = vld [vmem:[%s1 + $0x10] sm:$0xff]
        %v214 = vld [vmem:[%s1 + $0x18] sm:$0xff]
        %v215 = vld [vmem:[%s1 + $0x20] sm:$0xff]
        %v216 = vld [vmem:[%s1 + $0x28] sm:$0xff]
        %v217 = vld [vmem:[%s1 + $0x30] sm:$0xff]
        %v218 = vld [vmem:[%s1 + $0x38] sm:$0xff]
        %v219 = vld [vmem:[%s1 + $0x40] sm:$0xff]
        %v220 = vld [vmem:[%s1 + $0x48] sm:$0xff]
        %v221 = vld [vmem:[%s1 + $0x50] sm:$0xff]
        %v222 = vld [vmem:[%s1 + $0x58] sm:$0xff]
        %v223 = vld [vmem:[%s1 + $0x60] sm:$0xff]
        %v224 = vld [vmem:[%s1 + $0x68] sm:$0xff]
        %v225 = vld [vmem:[%s1 + $0x70] sm:$0xff]
        %v226 = vld [vmem:[%s1 + $0x78] sm:$0xff]
        %227 = vmatpush.msra.mxu0 %v226
        %228 = vmatpush.msra.mxu0 %v225
        %229 = vmatpush.msra.mxu0 %v224
        %230 = vmatpush.msra.mxu0 %v223
        %231 = vmatpush.msra.mxu0 %v222
        %232 = vmatpush.msra.mxu0 %v221
        %233 = vmatpush.msra.mxu0 %v220
        %234 = vmatpush.msra.mxu0 %v219
        %235 = vmatpush.msra.mxu0 %v218
        %236 = vmatpush.msra.mxu0 %v217
        %237 = vmatpush.msra.mxu0 %v216
        %238 = vmatpush.msra.mxu0 %v215
        %239 = vmatpush.msra.mxu0 %v214
        %240 = vmatpush.msra.mxu0 %v213
        %241 = vmatpush.msra.mxu0 %v212
        %242 = vmatpush.msra.mxu0 %v211
        %243 = vmatmul.f32.gmra.mxu0 %v195
        %v244 = vpop.f32.mrf.mxu0
        %v245 = vadd.f32 0.0, %v244
        %246 = vmatmul.f32.gmra.mxu0 %v196
        %v247 = vpop.f32.mrf.mxu0
        %v248 = vadd.f32 0.0, %v247
        %249 = vmatmul.f32.gmra.mxu0 %v197
        %v250 = vpop.f32.mrf.mxu0
        %v251 = vadd.f32 0.0, %v250
        %252 = vmatmul.f32.gmra.mxu0 %v198
        %v253 = vpop.f32.mrf.mxu0
        %v254 = vadd.f32 0.0, %v253
        %255 = vmatmul.f32.gmra.mxu0 %v199
        %v256 = vpop.f32.mrf.mxu0
        %v257 = vadd.f32 0.0, %v256
        %258 = vmatmul.f32.gmra.mxu0 %v200
        %v259 = vpop.f32.mrf.mxu0
        %v260 = vadd.f32 0.0, %v259
        %261 = vmatmul.f32.gmra.mxu0 %v201
        %v262 = vpop.f32.mrf.mxu0
        %v263 = vadd.f32 0.0, %v262
        %264 = vmatmul.f32.gmra.mxu0 %v202
        %v265 = vpop.f32.mrf.mxu0
        %v266 = vadd.f32 0.0, %v265
        %267 = vmatmul.f32.gmra.mxu0 %v203
        %v268 = vpop.f32.mrf.mxu0
        %v269 = vadd.f32 0.0, %v268
        %270 = vmatmul.f32.gmra.mxu0 %v204
        %v271 = vpop.f32.mrf.mxu0
        %v272 = vadd.f32 0.0, %v271
        %273 = vmatmul.f32.gmra.mxu0 %v205
        %v274 = vpop.f32.mrf.mxu0
        %v275 = vadd.f32 0.0, %v274
        %276 = vmatmul.f32.gmra.mxu0 %v206
        %v277 = vpop.f32.mrf.mxu0
        %v278 = vadd.f32 0.0, %v277
        %279 = vmatmul.f32.gmra.mxu0 %v207
        %v280 = vpop.f32.mrf.mxu0
        %v281 = vadd.f32 0.0, %v280
        %282 = vmatmul.f32.gmra.mxu0 %v208
        %v283 = vpop.f32.mrf.mxu0
        %v284 = vadd.f32 0.0, %v283
        %285 = vmatmul.f32.gmra.mxu0 %v209
        %v286 = vpop.f32.mrf.mxu0
        %v287 = vadd.f32 0.0, %v286
        %288 = vmatmul.f32.gmra.mxu0 %v210
        %v289 = vpop.f32.mrf.mxu0
        %v290 = vadd.f32 0.0, %v289
        %291 = vdwg.mxu0
        %v292 = vmax.f32 %v245, 0.0
        %v293 = vmax.f32 %v248, 0.0
        %v294 = vmax.f32 %v251, 0.0
        %v295 = vmax.f32 %v254, 0.0
        %v296 = vmax.f32 %v257, 0.0
        %v297 = vmax.f32 %v260, 0.0
        %v298 = vmax.f32 %v263, 0.0
        %v299 = vmax.f32 %v266, 0.0
        %v300 = vmax.f32 %v269, 0.0
        %v301 = vmax.f32 %v272, 0.0
        %v302 = vmax.f32 %v275, 0.0
        %v303 = vmax.f32 %v278, 0.0
        %v304 = vmax.f32 %v281, 0.0
        %v305 = vmax.f32 %v284, 0.0
        %v306 = vmax.f32 %v287, 0.0
        %v307 = vmax.f32 %v290, 0.0
        %v308 = vld [vmem:[%s2] sm:$0xff]
        %v309 = vld [vmem:[%s2 + $0x8] sm:$0xff]
        %v310 = vld [vmem:[%s2 + $0x10] sm:$0xff]
        %v311 = vld [vmem:[%s2 + $0x18] sm:$0xff]
        %v312 = vld [vmem:[%s2 + $0x20] sm:$0xff]
        %v313 = vld [vmem:[%s2 + $0x28] sm:$0xff]
        %v314 = vld [vmem:[%s2 + $0x30] sm:$0xff]
        %v315 = vld [vmem:[%s2 + $0x38] sm:$0xff]
        %v316 = vld [vmem:[%s2 + $0x40] sm:$0xff]
        %v317 = vld [vmem:[%s2 + $0x48] sm:$0xff]
        %v318 = vld [vmem:[%s2 + $0x50] sm:$0xff]
        %v319 = vld [vmem:[%s2 + $0x58] sm:$0xff]
        %v320 = vld [vmem:[%s2 + $0x60] sm:$0xff]
        %v321 = vld [vmem:[%s2 + $0x68] sm:$0xff]
        %v322 = vld [vmem:[%s2 + $0x70] sm:$0xff]
        %v323 = vld [vmem:[%s2 + $0x78] sm:$0xff]
        %324 = vmatpush.msra.mxu0 %v323
        %325 = vmatpush.msra.mxu0 %v322
        %326 = vmatpush.msra.mxu0 %v321
        %327 = vmatpush.msra.mxu0 %v320
        %328 = vmatpush.msra.mxu0 %v319
        %329 = vmatpush.msra.mxu0 %v318
        %330 = vmatpush.msra.mxu0 %v317
        %331 = vmatpush.msra.mxu0 %v316
        %332 = vmatpush.msra.mxu0 %v315
        %333 = vmatpush.msra.mxu0 %v314
        %334 = vmatpush.msra.mxu0 %v313
        %335 = vmatpush.msra.mxu0 %v312
        %336 = vmatpush.msra.mxu0 %v311
        %337 = vmatpush.msra.mxu0 %v310
        %338 = vmatpush.msra.mxu0 %v309
        %339 = vmatpush.msra.mxu0 %v308
        %340 = vmatmul.f32.gmra.mxu0 %v292
        %v341 = vpop.f32.mrf.mxu0
        %v342 = vadd.f32 0.0, %v341
        %343 = vmatmul.f32.gmra.mxu0 %v293
        %v344 = vpop.f32.mrf.mxu0
        %v345 = vadd.f32 0.0, %v344
        %346 = vmatmul.f32.gmra.mxu0 %v294
        %v347 = vpop.f32.mrf.mxu0
        %v348 = vadd.f32 0.0, %v347
        %349 = vmatmul.f32.gmra.mxu0 %v295
        %v350 = vpop.f32.mrf.mxu0
        %v351 = vadd.f32 0.0, %v350
        %352 = vmatmul.f32.gmra.mxu0 %v296
        %v353 = vpop.f32.mrf.mxu0
        %v354 = vadd.f32 0.0, %v353
        %355 = vmatmul.f32.gmra.mxu0 %v297
        %v356 = vpop.f32.mrf.mxu0
        %v357 = vadd.f32 0.0, %v356
        %358 = vmatmul.f32.gmra.mxu0 %v298
        %v359 = vpop.f32.mrf.mxu0
        %v360 = vadd.f32 0.0, %v359
        %361 = vmatmul.f32.gmra.mxu0 %v299
        %v362 = vpop.f32.mrf.mxu0
        %v363 = vadd.f32 0.0, %v362
        %364 = vmatmul.f32.gmra.mxu0 %v300
        %v365 = vpop.f32.mrf.mxu0
        %v366 = vadd.f32 0.0, %v365
        %367 = vmatmul.f32.gmra.mxu0 %v301
        %v368 = vpop.f32.mrf.mxu0
        %v369 = vadd.f32 0.0, %v368
        %370 = vmatmul.f32.gmra.mxu0 %v302
        %v371 = vpop.f32.mrf.mxu0
        %v372 = vadd.f32 0.0, %v371
        %373 = vmatmul.f32.gmra.mxu0 %v303
        %v374 = vpop.f32.mrf.mxu0
        %v375 = vadd.f32 0.0, %v374
        %376 = vmatmul.f32.gmra.mxu0 %v304
        %v377 = vpop.f32.mrf.mxu0
        %v378 = vadd.f32 0.0, %v377
        %379 = vmatmul.f32.gmra.mxu0 %v305
        %v380 = vpop.f32.mrf.mxu0
        %v381 = vadd.f32 0.0, %v380
        %382 = vmatmul.f32.gmra.mxu0 %v306
        %v383 = vpop.f32.mrf.mxu0
        %v384 = vadd.f32 0.0, %v383
        %385 = vmatmul.f32.gmra.mxu0 %v307
        %v386 = vpop.f32.mrf.mxu0
        %v387 = vadd.f32 0.0, %v386
        %388 = vdwg.mxu0
        %v389 = vxor.u32 %v342, 2147483648
        %v390 = vxor.u32 %v345, 2147483648
        %v391 = vxor.u32 %v348, 2147483648
        %v392 = vxor.u32 %v351, 2147483648
        %v393 = vxor.u32 %v354, 2147483648
        %v394 = vxor.u32 %v357, 2147483648
        %v395 = vxor.u32 %v360, 2147483648
        %v396 = vxor.u32 %v363, 2147483648
        %v397 = vxor.u32 %v366, 2147483648
        %v398 = vxor.u32 %v369, 2147483648
        %v399 = vxor.u32 %v372, 2147483648
        %v400 = vxor.u32 %v375, 2147483648
        %v401 = vxor.u32 %v378, 2147483648
        %v402 = vxor.u32 %v381, 2147483648
        %v403 = vxor.u32 %v384, 2147483648
        %v404 = vxor.u32 %v387, 2147483648
        %v405 = vmul.f32 %v389, 1.442695
        %v406 = vpow.pop %v405
        %v407 = vmul.f32 %v390, 1.442695
        %v408 = vpow.pop %v407
        %v409 = vmul.f32 %v391, 1.442695
        %v410 = vpow.pop %v409
        %v411 = vmul.f32 %v392, 1.442695
        %v412 = vpow.pop %v411
        %v413 = vmul.f32 %v393, 1.442695
        %v414 = vpow.pop %v413
        %v415 = vmul.f32 %v394, 1.442695
        %v416 = vpow.pop %v415
        %v417 = vmul.f32 %v395, 1.442695
        %v418 = vpow.pop %v417
        %v419 = vmul.f32 %v396, 1.442695
        %v420 = vpow.pop %v419
        %v421 = vmul.f32 %v397, 1.442695
        %v422 = vpow.pop %v421
        %v423 = vmul.f32 %v398, 1.442695
        %v424 = vpow.pop %v423
        %v425 = vmul.f32 %v399, 1.442695
        %v426 = vpow.pop %v425
        %v427 = vmul.f32 %v400, 1.442695
        %v428 = vpow.pop %v427
        %v429 = vmul.f32 %v401, 1.442695
        %v430 = vpow.pop %v429
        %v431 = vmul.f32 %v402, 1.442695
        %v432 = vpow.pop %v431
        %v433 = vmul.f32 %v403, 1.442695
        %v434 = vpow.pop %v433
        %v435 = vmul.f32 %v404, 1.442695
        %v436 = vpow.pop %v435
        %v437 = vadd.f32 %v406, 1.0
        %v438 = vadd.f32 %v408, 1.0
        %v439 = vadd.f32 %v410, 1.0
        %v440 = vadd.f32 %v412, 1.0
        %v441 = vadd.f32 %v414, 1.0
        %v442 = vadd.f32 %v416, 1.0
        %v443 = vadd.f32 %v418, 1.0
        %v444 = vadd.f32 %v420, 1.0
        %v445 = vadd.f32 %v422, 1.0
        %v446 = vadd.f32 %v424, 1.0
        %v447 = vadd.f32 %v426, 1.0
        %v448 = vadd.f32 %v428, 1.0
        %v449 = vadd.f32 %v430, 1.0
        %v450 = vadd.f32 %v432, 1.0
        %v451 = vadd.f32 %v434, 1.0
        %v452 = vadd.f32 %v436, 1.0
        %v453 = vrcp.pop %v437
        %v454 = vmul.f32 %v437, %v453
        %v455 = vsub.f32 1.0, %v454
        %v456 = vmul.f32 %v453, %v455
        %v457 = vadd.f32 %v453, %v456
        %vm458 = vweird.f32 %v437
        %vm459 = vweird.f32 %v453
        %vm460 = vmor %vm458, %vm459
        %v461 = vsel %vm460, %v453, %v457
        %v462 = vand.u32 2147483647, %v437
        %vm463 = vcmp.eq.f32.partialorder %v462, 8.507059e+37
        %v464 = vand.u32 %v437, 2147483648
        %v465 = vor.u32 1.1754944e-38, %v464
        %v466 = vsel %vm463, %v465, %v461
        %v467 = vmul.f32 1.0, %v466
        %v468 = vrcp.pop %v438
        %v469 = vmul.f32 %v438, %v468
        %v470 = vsub.f32 1.0, %v469
        %v471 = vmul.f32 %v468, %v470
        %v472 = vadd.f32 %v468, %v471
        %vm473 = vweird.f32 %v438
        %vm474 = vweird.f32 %v468
        %vm475 = vmor %vm473, %vm474
        %v476 = vsel %vm475, %v468, %v472
        %v477 = vand.u32 2147483647, %v438
        %vm478 = vcmp.eq.f32.partialorder %v477, 8.507059e+37
        %v479 = vand.u32 %v438, 2147483648
        %v480 = vor.u32 1.1754944e-38, %v479
        %v481 = vsel %vm478, %v480, %v476
        %v482 = vmul.f32 1.0, %v481
        %v483 = vrcp.pop %v439
        %v484 = vmul.f32 %v439, %v483
        %v485 = vsub.f32 1.0, %v484
        %v486 = vmul.f32 %v483, %v485
        %v487 = vadd.f32 %v483, %v486
        %vm488 = vweird.f32 %v439
        %vm489 = vweird.f32 %v483
        %vm490 = vmor %vm488, %vm489
        %v491 = vsel %vm490, %v483, %v487
        %v492 = vand.u32 2147483647, %v439
        %vm493 = vcmp.eq.f32.partialorder %v492, 8.507059e+37
        %v494 = vand.u32 %v439, 2147483648
        %v495 = vor.u32 1.1754944e-38, %v494
        %v496 = vsel %vm493, %v495, %v491
        %v497 = vmul.f32 1.0, %v496
        %v498 = vrcp.pop %v440
        %v499 = vmul.f32 %v440, %v498
        %v500 = vsub.f32 1.0, %v499
        %v501 = vmul.f32 %v498, %v500
        %v502 = vadd.f32 %v498, %v501
        %vm503 = vweird.f32 %v440
        %vm504 = vweird.f32 %v498
        %vm505 = vmor %vm503, %vm504
        %v506 = vsel %vm505, %v498, %v502
        %v507 = vand.u32 2147483647, %v440
        %vm508 = vcmp.eq.f32.partialorder %v507, 8.507059e+37
        %v509 = vand.u32 %v440, 2147483648
        %v510 = vor.u32 1.1754944e-38, %v509
        %v511 = vsel %vm508, %v510, %v506
        %v512 = vmul.f32 1.0, %v511
        %v513 = vrcp.pop %v441
        %v514 = vmul.f32 %v441, %v513
        %v515 = vsub.f32 1.0, %v514
        %v516 = vmul.f32 %v513, %v515
        %v517 = vadd.f32 %v513, %v516
        %vm518 = vweird.f32 %v441
        %vm519 = vweird.f32 %v513
        %vm520 = vmor %vm518, %vm519
        %v521 = vsel %vm520, %v513, %v517
        %v522 = vand.u32 2147483647, %v441
        %vm523 = vcmp.eq.f32.partialorder %v522, 8.507059e+37
        %v524 = vand.u32 %v441, 2147483648
        %v525 = vor.u32 1.1754944e-38, %v524
        %v526 = vsel %vm523, %v525, %v521
        %v527 = vmul.f32 1.0, %v526
        %v528 = vrcp.pop %v442
        %v529 = vmul.f32 %v442, %v528
        %v530 = vsub.f32 1.0, %v529
        %v531 = vmul.f32 %v528, %v530
        %v532 = vadd.f32 %v528, %v531
        %vm533 = vweird.f32 %v442
        %vm534 = vweird.f32 %v528
        %vm535 = vmor %vm533, %vm534
        %v536 = vsel %vm535, %v528, %v532
        %v537 = vand.u32 2147483647, %v442
        %vm538 = vcmp.eq.f32.partialorder %v537, 8.507059e+37
        %v539 = vand.u32 %v442, 2147483648
        %v540 = vor.u32 1.1754944e-38, %v539
        %v541 = vsel %vm538, %v540, %v536
        %v542 = vmul.f32 1.0, %v541
        %v543 = vrcp.pop %v443
        %v544 = vmul.f32 %v443, %v543
        %v545 = vsub.f32 1.0, %v544
        %v546 = vmul.f32 %v543, %v545
        %v547 = vadd.f32 %v543, %v546
        %vm548 = vweird.f32 %v443
        %vm549 = vweird.f32 %v543
        %vm550 = vmor %vm548, %vm549
        %v551 = vsel %vm550, %v543, %v547
        %v552 = vand.u32 2147483647, %v443
        %vm553 = vcmp.eq.f32.partialorder %v552, 8.507059e+37
        %v554 = vand.u32 %v443, 2147483648
        %v555 = vor.u32 1.1754944e-38, %v554
        %v556 = vsel %vm553, %v555, %v551
        %v557 = vmul.f32 1.0, %v556
        %v558 = vrcp.pop %v444
        %v559 = vmul.f32 %v444, %v558
        %v560 = vsub.f32 1.0, %v559
        %v561 = vmul.f32 %v558, %v560
        %v562 = vadd.f32 %v558, %v561
        %vm563 = vweird.f32 %v444
        %vm564 = vweird.f32 %v558
        %vm565 = vmor %vm563, %vm564
        %v566 = vsel %vm565, %v558, %v562
        %v567 = vand.u32 2147483647, %v444
        %vm568 = vcmp.eq.f32.partialorder %v567, 8.507059e+37
        %v569 = vand.u32 %v444, 2147483648
        %v570 = vor.u32 1.1754944e-38, %v569
        %v571 = vsel %vm568, %v570, %v566
        %v572 = vmul.f32 1.0, %v571
        %v573 = vrcp.pop %v445
        %v574 = vmul.f32 %v445, %v573
        %v575 = vsub.f32 1.0, %v574
        %v576 = vmul.f32 %v573, %v575
        %v577 = vadd.f32 %v573, %v576
        %vm578 = vweird.f32 %v445
        %vm579 = vweird.f32 %v573
        %vm580 = vmor %vm578, %vm579
        %v581 = vsel %vm580, %v573, %v577
        %v582 = vand.u32 2147483647, %v445
        %vm583 = vcmp.eq.f32.partialorder %v582, 8.507059e+37
        %v584 = vand.u32 %v445, 2147483648
        %v585 = vor.u32 1.1754944e-38, %v584
        %v586 = vsel %vm583, %v585, %v581
        %v587 = vmul.f32 1.0, %v586
        %v588 = vrcp.pop %v446
        %v589 = vmul.f32 %v446, %v588
        %v590 = vsub.f32 1.0, %v589
        %v591 = vmul.f32 %v588, %v590
        %v592 = vadd.f32 %v588, %v591
        %vm593 = vweird.f32 %v446
        %vm594 = vweird.f32 %v588
        %vm595 = vmor %vm593, %vm594
        %v596 = vsel %vm595, %v588, %v592
        %v597 = vand.u32 2147483647, %v446
        %vm598 = vcmp.eq.f32.partialorder %v597, 8.507059e+37
        %v599 = vand.u32 %v446, 2147483648
        %v600 = vor.u32 1.1754944e-38, %v599
        %v601 = vsel %vm598, %v600, %v596
        %v602 = vmul.f32 1.0, %v601
        %v603 = vrcp.pop %v447
        %v604 = vmul.f32 %v447, %v603
        %v605 = vsub.f32 1.0, %v604
        %v606 = vmul.f32 %v603, %v605
        %v607 = vadd.f32 %v603, %v606
        %vm608 = vweird.f32 %v447
        %vm609 = vweird.f32 %v603
        %vm610 = vmor %vm608, %vm609
        %v611 = vsel %vm610, %v603, %v607
        %v612 = vand.u32 2147483647, %v447
        %vm613 = vcmp.eq.f32.partialorder %v612, 8.507059e+37
        %v614 = vand.u32 %v447, 2147483648
        %v615 = vor.u32 1.1754944e-38, %v614
        %v616 = vsel %vm613, %v615, %v611
        %v617 = vmul.f32 1.0, %v616
        %v618 = vrcp.pop %v448
        %v619 = vmul.f32 %v448, %v618
        %v620 = vsub.f32 1.0, %v619
        %v621 = vmul.f32 %v618, %v620
        %v622 = vadd.f32 %v618, %v621
        %vm623 = vweird.f32 %v448
        %vm624 = vweird.f32 %v618
        %vm625 = vmor %vm623, %vm624
        %v626 = vsel %vm625, %v618, %v622
        %v627 = vand.u32 2147483647, %v448
        %vm628 = vcmp.eq.f32.partialorder %v627, 8.507059e+37
        %v629 = vand.u32 %v448, 2147483648
        %v630 = vor.u32 1.1754944e-38, %v629
        %v631 = vsel %vm628, %v630, %v626
        %v632 = vmul.f32 1.0, %v631
        %v633 = vrcp.pop %v449
        %v634 = vmul.f32 %v449, %v633
        %v635 = vsub.f32 1.0, %v634
        %v636 = vmul.f32 %v633, %v635
        %v637 = vadd.f32 %v633, %v636
        %vm638 = vweird.f32 %v449
        %vm639 = vweird.f32 %v633
        %vm640 = vmor %vm638, %vm639
        %v641 = vsel %vm640, %v633, %v637
        %v642 = vand.u32 2147483647, %v449
        %vm643 = vcmp.eq.f32.partialorder %v642, 8.507059e+37
        %v644 = vand.u32 %v449, 2147483648
        %v645 = vor.u32 1.1754944e-38, %v644
        %v646 = vsel %vm643, %v645, %v641
        %v647 = vmul.f32 1.0, %v646
        %v648 = vrcp.pop %v450
        %v649 = vmul.f32 %v450, %v648
        %v650 = vsub.f32 1.0, %v649
        %v651 = vmul.f32 %v648, %v650
        %v652 = vadd.f32 %v648, %v651
        %vm653 = vweird.f32 %v450
        %vm654 = vweird.f32 %v648
        %vm655 = vmor %vm653, %vm654
        %v656 = vsel %vm655, %v648, %v652
        %v657 = vand.u32 2147483647, %v450
        %vm658 = vcmp.eq.f32.partialorder %v657, 8.507059e+37
        %v659 = vand.u32 %v450, 2147483648
        %v660 = vor.u32 1.1754944e-38, %v659
        %v661 = vsel %vm658, %v660, %v656
        %v662 = vmul.f32 1.0, %v661
        %v663 = vrcp.pop %v451
        %v664 = vmul.f32 %v451, %v663
        %v665 = vsub.f32 1.0, %v664
        %v666 = vmul.f32 %v663, %v665
        %v667 = vadd.f32 %v663, %v666
        %vm668 = vweird.f32 %v451
        %vm669 = vweird.f32 %v663
        %vm670 = vmor %vm668, %vm669
        %v671 = vsel %vm670, %v663, %v667
        %v672 = vand.u32 2147483647, %v451
        %vm673 = vcmp.eq.f32.partialorder %v672, 8.507059e+37
        %v674 = vand.u32 %v451, 2147483648
        %v675 = vor.u32 1.1754944e-38, %v674
        %v676 = vsel %vm673, %v675, %v671
        %v677 = vmul.f32 1.0, %v676
        %v678 = vrcp.pop %v452
        %v679 = vmul.f32 %v452, %v678
        %v680 = vsub.f32 1.0, %v679
        %v681 = vmul.f32 %v678, %v680
        %v682 = vadd.f32 %v678, %v681
        %vm683 = vweird.f32 %v452
        %vm684 = vweird.f32 %v678
        %vm685 = vmor %vm683, %vm684
        %v686 = vsel %vm685, %v678, %v682
        %v687 = vand.u32 2147483647, %v452
        %vm688 = vcmp.eq.f32.partialorder %v687, 8.507059e+37
        %v689 = vand.u32 %v452, 2147483648
        %v690 = vor.u32 1.1754944e-38, %v689
        %v691 = vsel %vm688, %v690, %v686
        %v692 = vmul.f32 1.0, %v691
        %vm693 = vcmask 7168
        %694 = vst.msk [vmem:[%s193] sm:$0xff] %vm693, %v467
        %695 = vst.msk [vmem:[%s193 + $0x8] sm:$0xff] %vm693, %v482
        %696 = vst.msk [vmem:[%s193 + $0x10] sm:$0xff] %vm693, %v497
        %697 = vst.msk [vmem:[%s193 + $0x18] sm:$0xff] %vm693, %v512
        %698 = vst.msk [vmem:[%s193 + $0x20] sm:$0xff] %vm693, %v527
        %699 = vst.msk [vmem:[%s193 + $0x28] sm:$0xff] %vm693, %v542
        %700 = vst.msk [vmem:[%s193 + $0x30] sm:$0xff] %vm693, %v557
        %701 = vst.msk [vmem:[%s193 + $0x38] sm:$0xff] %vm693, %v572
        %702 = vst.msk [vmem:[%s193 + $0x40] sm:$0xff] %vm693, %v587
        %703 = vst.msk [vmem:[%s193 + $0x48] sm:$0xff] %vm693, %v602
        %704 = vst.msk [vmem:[%s193 + $0x50] sm:$0xff] %vm693, %v617
        %705 = vst.msk [vmem:[%s193 + $0x58] sm:$0xff] %vm693, %v632
        %706 = vst.msk [vmem:[%s193 + $0x60] sm:$0xff] %vm693, %v647
        %707 = vst.msk [vmem:[%s193 + $0x68] sm:$0xff] %vm693, %v662
        %708 = vst.msk [vmem:[%s193 + $0x70] sm:$0xff] %vm693, %v677
        %709 = vst.msk [vmem:[%s193 + $0x78] sm:$0xff] %vm693, %v692
        %s710 = smul.u32 16, %s17
        %p711 = scmp.lt.s32.totalorder %s710, 31
        %s712 = scalar_select %p711, %s710, 31
        %s713 = smul.addr %s712, 8
        %s714 = scalar_lea.vmem %s3, %s713
        // Predicated region
        $region37: #{tpu_custom_call.1} parent=31 // pred_check
          %p715 = pneg %p103
        $region38: #{tpu_custom_call.1} parent=31 // pred_check_branch
          %717 = sbr.rel (%p715) target = $region40
        $region39: #{tpu_custom_call.1} parent=31 // pred_region
          %s718 = smul.u32 16, %s17
        $region40: #{tpu_custom_call.1} parent=31 // pred_fallthru
          _
      $region32: #{tpu_custom_call.1} parent=5 // pred_fallthru
        _
      %p719 = scmp.le.s32.totalorder 2, %s12
      // Predicated region
      $region41: #{tpu_custom_call.1} parent=5 // pred_check
        %p720 = pneg %p719
      $region42: #{tpu_custom_call.1} parent=5 // pred_check_branch
        %722 = sbr.rel (%p720) target = $region44
      $region43: #{tpu_custom_call.1} parent=5 // pred_region
        %s723 = ssub.s32 %s12, 2
        // Predicated region
        $region45: #{tpu_custom_call.1} parent=43 // pred_check
          %p724 = pneg %p109
        $region46: #{tpu_custom_call.1} parent=43 // pred_check_branch
          %726 = sbr.rel (%p724) target = $region48
        $region47: #{tpu_custom_call.1} parent=43 // pred_region
          %s727 = smul.u32 16, %s18
          %p728 = scmp.lt.s32.totalorder %s727, 31
          %s729 = scalar_select %p728, %s727, 31
          %s730 = smul.addr %s729, 8
          %s731 = scalar_lea.vmem %s3, %s730
        $region48: #{tpu_custom_call.1} parent=43 // pred_fallthru
          _
      $region44: #{tpu_custom_call.1} parent=5 // pred_fallthru
        _
    $region6: #{tpu_custom_call.1} parent=1 // loop_footer
      %s16 = sadd.s32 1, %s12
    $region7: #{tpu_custom_call.1} parent=1 // loop_footer_branch
      %11 = sbr.rel target = $region3
    $region8: #{tpu_custom_call.1} parent=1 // loop_exit
      _
    %732 = vsyncpa [#allocation3], 1
    %s733 = scalar_lea.sflag [#allocation3], 1
    %734 = vsyncpa %s733, 1

</llo_original>
